<compile_context>
chip_gen: v7x
topology: tpu7x:2x2x1
jax: 0.10.0
libtpu: 0.0.40
codegen_flags: <defaults>
</compile_context>

<pallas_src>
import math
import functools

import jax
import jax.numpy as jnp
from jax import lax
from jax.experimental import pallas as pl
from jax.experimental.pallas import tpu as pltpu


# ----------------------------------------------------------------------------
# Kernel: per-row L2 norm + scale, on a (row_tile, D) tile
# ----------------------------------------------------------------------------
def _scale_norm_kernel(scale_ref, x_ref, o_ref, *, eps):
    x = x_ref[...].astype(jnp.float32)                       # (TR, D), f32 math
    ssq = jnp.sum(x * x, axis=-1, keepdims=True)             # (TR, 1)
    # scale / max(sqrt(ssq), eps) == scale * rsqrt(max(ssq, eps^2))  (ssq >= 0)
    inv = scale_ref[0] * lax.rsqrt(jnp.maximum(ssq, eps * eps))
    o_ref[...] = (x * inv).astype(o_ref.dtype)


def _round_up(n, m):
    return ((n + m - 1) // m) * m


# ----------------------------------------------------------------------------
# Wrapper
# ----------------------------------------------------------------------------
def scale_norm_forward(x, scale, *, eps=1e-5, row_tile=None, donate_x=False,
                       core_parallel=False):
    """ScaleNorm forward: x * scale / max(||x||_2(last dim), eps). Any leading dims."""
    orig_shape = x.shape
    D = orig_shape[-1]
    R = 1
    for s in orig_shape[:-1]:
        R *= s

    itemsize = jnp.dtype(x.dtype).itemsize

    # ---- row-tile selection ------------------------------------------------
    # Target ~2 MiB of *input dtype* per tile (85%+ of HBM roofline measured on
    # v6e); cap at 4096 rows.  Second-to-last block dim must be a multiple of 8;
    # last block dim equals the full array dim D (exempt from the 128 rule).
    if row_tile is None:
        target_bytes = 2 << 20
        row_tile = max(8, target_bytes // (D * itemsize))
        row_tile = min(4096, (row_tile // 8) * 8)
    row_tile = max(8, _round_up(int(row_tile), 8))
    row_tile = min(row_tile, _round_up(R, 8))

    x2 = x.reshape(R, D)                      # no padding: ragged tail is masked
    grid = (pl.cdiv(R, row_tile),)

    # ---- VMEM budget ---------------------------------------------------------
    # 2 double-buffered input tiles + 2 output tiles (x.dtype) + f32 compute
    # temporaries + headroom.  Floor at 16 MiB, cap at 48 MiB (< v7x 64 MiB
    # physical; lifts v5e's 16 MiB default scoped limit when tiles are large).
    tile_in = row_tile * D * itemsize
    tile_f32 = row_tile * D * 4
    vmem_budget = 2 * tile_in + 2 * tile_in + 4 * tile_f32 + (2 << 20)
    vmem_budget = int(min(max(vmem_budget, 16 << 20), 48 << 20))

    scale_arr = jnp.asarray(scale, dtype=jnp.float32).reshape(1)
    row_sem = pltpu.CORE_PARALLEL if core_parallel else "parallel"

    kernel = functools.partial(_scale_norm_kernel, eps=float(eps))
    out = pl.pallas_call(
        kernel,
        out_shape=jax.ShapeDtypeStruct((R, D), x.dtype),
        grid=grid,
        in_specs=[
            pl.BlockSpec(memory_space=pltpu.MemorySpace.SMEM),   # scale scalar
            pl.BlockSpec((row_tile, D), lambda i: (i, 0)),       # x row-tile
        ],
        out_specs=pl.BlockSpec((row_tile, D), lambda i: (i, 0)),
        compiler_params=pltpu.CompilerParams(
            dimension_semantics=(row_sem,),
            vmem_limit_bytes=vmem_budget,
        ),
        # In-place path when the caller donates x (alias now targets the
        # caller's buffer since the padded temporary was removed).
        input_output_aliases=({1: 0} if donate_x else {}),
    )(scale_arr, x2)

    return out.reshape(orig_shape)


# ----------------------------------------------------------------------------
# Demo / correctness check
# ----------------------------------------------------------------------------
if __name__ == "__main__":
    D_MODEL = 32
    SEQ = 8
    BATCH = 2
    EPS = 1e-5
    SCALE = math.sqrt(D_MODEL)   # typical ScaleNorm init value

    def ref_scale_norm(x, scale, eps):
        norm = jnp.maximum(jnp.linalg.norm(x, axis=-1, keepdims=True), eps)
        return x * (scale / norm)

    key = jax.random.PRNGKey(0)
    x = jax.random.normal(key, (SEQ, BATCH, D_MODEL), dtype=jnp.float32)

    out = scale_norm_forward(x, SCALE, eps=EPS)
    jax.block_until_ready(out)
    assert out.shape == x.shape
    assert jnp.allclose(out, ref_scale_norm(x, SCALE, EPS), atol=2e-5, rtol=2e-5)

    # Ragged tail path: R = 15 rows with tile 8 -> grid of 2, last block partial
    # (no wrapper pad, no output slice; masked rows never leak into real rows).
    x2 = jax.random.normal(jax.random.PRNGKey(1), (5, 3, D_MODEL), dtype=jnp.float32)
    out2 = scale_norm_forward(x2, SCALE, eps=EPS, row_tile=8)
    jax.block_until_ready(out2)
    assert jnp.allclose(out2, ref_scale_norm(x2, SCALE, EPS), atol=2e-5, rtol=2e-5)

    # Tiny-magnitude input exercises the eps clamp branch (rsqrt(eps^2) path).
    x3 = jnp.full((4, D_MODEL), 1e-9, dtype=jnp.float32)
    out3 = scale_norm_forward(x3, SCALE, eps=EPS)
    jax.block_until_ready(out3)
    assert jnp.allclose(out3, ref_scale_norm(x3, SCALE, EPS), atol=1e-6, rtol=1e-5)

    # bf16 path: tiles sized by itemsize, output downcast on store.
    x4 = jax.random.normal(jax.random.PRNGKey(2), (SEQ, BATCH, D_MODEL),
                           dtype=jnp.bfloat16)
    out4 = scale_norm_forward(x4, SCALE, eps=EPS)
    jax.block_until_ready(out4)
    ref4 = ref_scale_norm(x4.astype(jnp.float32), SCALE, EPS)
    assert jnp.allclose(out4.astype(jnp.float32), ref4, atol=2e-2, rtol=2e-2)

    print("KERNEL_OK")
</pallas_src>

<mosaic_0001>
module attributes {stable_mosaic.version = 11 : i64} {
  func.func @_scale_norm_kernel(%arg0: i32, %arg1: memref<1xf32, #tpu.memory_space<smem>>, %arg2: memref<16x32xf32, #tpu.memory_space<vmem>>, %arg3: memref<16x32xf32, #tpu.memory_space<vmem>>) attributes {dimension_semantics = [#tpu.dimension_semantics<parallel>], iteration_bounds = array<i64: 1>, scalar_prefetch = 0 : i64, scratch_operands = 0 : i64, tpu.core_type = #tpu.core_type<tc>, window_params = [{transform_indices = @transform_0, window_bounds = array<i64: 1>}, {transform_indices = @transform_1, window_bounds = array<i64: 16, 32>}, {transform_indices = @transform_2, window_bounds = array<i64: 16, 32>}]} {
    %c0 = arith.constant 0 : index
    %c0_0 = arith.constant 0 : index
    %0 = vector.load %arg2[%c0, %c0_0] : memref<16x32xf32, #tpu.memory_space<vmem>>, vector<16x32xf32>
    %1 = arith.mulf %0, %0 : vector<16x32xf32>
    %cst = arith.constant dense<0.000000e+00> : vector<16xf32>
    %2 = vector.multi_reduction <add>, %1, %cst [1] : vector<16x32xf32> to vector<16xf32>
    %3 = vector.shape_cast %2 : vector<16xf32> to vector<16x1xf32>
    %c0_1 = arith.constant 0 : index
    %4 = memref.load %arg1[%c0_1] : memref<1xf32, #tpu.memory_space<smem>>
    %cst_2 = arith.constant 1.000000e-10 : f32
    %5 = vector.broadcast %cst_2 : f32 to vector<16x1xf32>
    %6 = arith.maximumf %3, %5 : vector<16x1xf32>
    %7 = math.rsqrt %6 : vector<16x1xf32>
    %8 = vector.broadcast %4 : f32 to vector<16x1xf32>
    %9 = arith.mulf %8, %7 : vector<16x1xf32>
    %10 = vector.broadcast %9 : vector<16x1xf32> to vector<16x32xf32>
    %11 = arith.mulf %0, %10 : vector<16x32xf32>
    %c0_3 = arith.constant 0 : index
    %c0_4 = arith.constant 0 : index
    %12 = vector.load %arg3[%c0_3, %c0_4] : memref<16x32xf32, #tpu.memory_space<vmem>>, vector<16x32xf32>
    tpu.vector_store %arg3[%c0_3, %c0_4], %11 {strides = array<i32>} : memref<16x32xf32, #tpu.memory_space<vmem>>, vector<16x32xf32>,
    return
  }
  func.func @transform_0(%arg0: i32) -> i32 {
    %c0_i32 = arith.constant 0 : i32
    %c0_i32_0 = arith.constant 0 : i32
    return %c0_i32 : i32
  }
  func.func @transform_1(%arg0: i32) -> (i32, i32) {
    %c0_i32 = arith.constant 0 : i32
    %c0_i32_0 = arith.constant 0 : i32
    return %arg0, %c0_i32 : i32, i32
  }
  func.func @transform_2(%arg0: i32) -> (i32, i32) {
    %c0_i32 = arith.constant 0 : i32
    %c0_i32_0 = arith.constant 0 : i32
    return %arg0, %c0_i32 : i32, i32
  }
}

</mosaic_0001>

<llo_original>
// kernel: tpu_custom_call.1
$region0: #{tpu_custom_call.1}
  #allocation0 [shape = 'u32[]', space=smem, size = 0x4, offset = 0x4, fixed_abs, tag = 'smem constant byte address 0x4 - core index']
  #allocation1 [shape = 'u32[144,128]{1,0:T(1,128)}', space=vmem, size = 0x12000, scoped, tag = 'internal scratch']
  #allocation2 [shape = 'f32[1]{0:T(128)S(6)}', space=smem, size = 0x200, scoped, tag = 'scoped memory for tpu_custom_call.1']
  %s0 = inlined_call_operand.<no memory space> [shape: f32[1], index: 0, kind: input, shape index: {}]
  %s1 = inlined_call_operand.hbm [shape: f32[16,32], index: 1, kind: input, shape index: {}]
  %s2 = inlined_call_operand.hbm [shape: f32[16,32], index: 2, kind: output, shape index: {}]
  %s3 = sld [smem:[#allocation0]]
  $region22: #{tpu_custom_call.1} parent=0
    _
  %s5 = ssub.s32 1, %s3
  %s6 = scalar_select 0, %s5, %s3
  %7 = sst [smem:[#allocation2]] %s0
  $region1: #{tpu_custom_call.1} parent=0
    #allocation3 [shape = 'u8[8192]{0}', space=vmem, size = 0x2000, scoped, tag = 'input window, operand 1, single buffered']
    #allocation4 [shape = 's32[1]{0}', space=sflag, size = 0x4, scoped, tag = 'scoped memory for tpu_custom_call.1']
    #allocation5 [shape = 's32[1]{0}', space=sflag, size = 0x4, scoped, tag = 'scoped memory for tpu_custom_call.1']
    #allocation6 [shape = 'u8[8192]{0}', space=vmem, size = 0x2000, scoped, tag = 'output window, operand 0, single buffered']
    %8 = vsyncpa [#allocation4], 0
    %9 = vsyncpa [#allocation5], 0
    // Predicated region
    $region2: #{tpu_custom_call.1} parent=1 // pred_check
      _
    $region3: #{tpu_custom_call.1} parent=1 // pred_check_branch
      %11 = sbr.rel (0) target = $region5
    $region4: #{tpu_custom_call.1} parent=1 // pred_region
      _
    $region5: #{tpu_custom_call.1} parent=1 // pred_fallthru
      _
    // Predicated region
    $region6: #{tpu_custom_call.1} parent=1 // pred_check
      _
    $region7: #{tpu_custom_call.1} parent=1 // pred_check_branch
      %13 = sbr.rel (0) target = $region9
    $region8: #{tpu_custom_call.1} parent=1 // pred_region
      %s15 = ssub.s32 256, 256
      %16 = vsyncadd [#allocation4], %s15
      %s17 = sshll.u32 [#allocation3], 4
      %s18 = int_to_ptr.vmem [resolvable:$true] %s17
      %23 = dma.hbm_to_vmem [thread:$0]  %s1, 256, %s18, [#allocation4], 128, 128, 8
    $region9: #{tpu_custom_call.1} parent=1 // pred_fallthru
      _
    // Predicated region
    $region10: #{tpu_custom_call.1} parent=1 // pred_check
      _
    $region11: #{tpu_custom_call.1} parent=1 // pred_check_branch
      %25 = sbr.rel (0) target = $region13
    $region12: #{tpu_custom_call.1} parent=1 // pred_region
      %26 = dma.done [#allocation4], 256
    $region13: #{tpu_custom_call.1} parent=1 // pred_fallthru
      _
    %v27 = vld [vmem:[#allocation3] sm:$0xff]
    %v28 = vld [vmem:[#allocation3 + $0x8] sm:$0xff]
    %v29 = vmul.f32 %v27, %v27
    %v30 = vmul.f32 %v28, %v28
    %vm31 = vcmask 261120
    %v32 = vsel %vm31, %v29, 0.0
    %33 = vadd.xlane.f32.xlu0 %v32
    %v34 = vpop.xlane.xlu0 %33
    %v35 = vsel %vm31, %v30, 0.0
    %36 = vadd.xlane.f32.xlu0 %v35
    %v37 = vpop.xlane.xlu0 %36
    %s38 = sld [smem:[#allocation2]]
    %v39 = vmax.f32 %v34, 1e-10
    %v40 = vmax.f32 %v37, 1e-10
    %v41 = vrsqrt.pop %v39
    %v42 = vrsqrt.pop %v40
    %v43 = vstv %s38
    %v44 = vmul.f32 %v43, %v41
    %v45 = vmul.f32 %v43, %v42
    %v46 = vmul.f32 %v27, %v44
    %v47 = vmul.f32 %v28, %v45
    %48 = vst.msk [vmem:[#allocation6] sm:$0xff] %vm31, %v46
    %49 = vst.msk [vmem:[#allocation6 + $0x8] sm:$0xff] %vm31, %v47
    // Predicated region
    $region14: #{tpu_custom_call.1} parent=1 // pred_check
      _
    $region15: #{tpu_custom_call.1} parent=1 // pred_check_branch
      %51 = sbr.rel (0) target = $region17
    $region16: #{tpu_custom_call.1} parent=1 // pred_region
      %s53 = ssub.s32 256, 256
      %54 = vsyncadd [#allocation5], %s53
      %s55 = sshll.u32 [#allocation6], 4
      %s56 = int_to_ptr.vmem [resolvable:$true] %s55
      %61 = dma.vmem_to_hbm [thread:$0]  %s56, 256, %s2, [#allocation5], 128, 128, 8
    $region17: #{tpu_custom_call.1} parent=1 // pred_fallthru
      _
    // Predicated region
    $region18: #{tpu_custom_call.1} parent=1 // pred_check
      _
    $region19: #{tpu_custom_call.1} parent=1 // pred_check_branch
      %63 = sbr.rel (0) target = $region21
    $region20: #{tpu_custom_call.1} parent=1 // pred_region
      %64 = dma.done [#allocation5], 256
    $region21: #{tpu_custom_call.1} parent=1 // pred_fallthru
      _
    %65 = vsyncpa [#allocation4], 1
    %66 = vsyncpa [#allocation5], 1

</llo_original>
